<compile_context>
chip_gen: v7x
topology: tpu7x:2x2x1
jax: 0.10.0
libtpu: 0.0.40
codegen_flags: <defaults>
</compile_context>

<pallas_src>
from functools import partial

import jax
import jax.numpy as jnp
from jax import lax
from jax.experimental import pallas as pl
from jax.experimental.pallas import tpu as pltpu


_VMEM_LIMIT = 40 * 1024 * 1024    # < v7x's 64 MiB/TC physical VMEM, > v5e's 16 MiB default
_TILE_B_DEFAULT = 8192            # rows per grid step on the tiled path (feedback: 8k-16k)
_ACC_TILE_W_DEFAULT = 16384       # lane tile for the standalone accuracy kernel


def _round_up(x, m):
    return (x + m - 1) // m * m


# ----------------------------------------------------------------------------
# fused cross-entropy (mean) + accuracy
# ----------------------------------------------------------------------------
def _fused_small(logits2d, labels2d, inv_B):
    """Single full-block path (B <= TILE_B): no padding, no masking, grid=(1,)."""
    B, C = logits2d.shape

    def kernel(x_ref, y_ref, loss_ref, acc_ref):
        x = x_ref[...].astype(jnp.float32)                     # (B, C)
        y = y_ref[...]                                         # (B, 1) int32
        m = jnp.max(x, axis=1, keepdims=True)                  # (B, 1)
        lse = jnp.log(jnp.sum(jnp.exp(x - m), axis=1, keepdims=True))
        cls = lax.broadcasted_iota(jnp.int32, (B, C), 1)
        picked = jnp.sum(jnp.where(cls == y, x - m, 0.0), axis=1, keepdims=True)
        loss_ref[...] = jnp.zeros_like(loss_ref)
        loss_ref[...] += jnp.sum(lse - picked) * inv_B
        # first-occurrence argmax over the class axis (matches jnp.argmax ties)
        pred = jnp.min(jnp.where(x == m, cls, C), axis=1, keepdims=True)
        acc_ref[...] = jnp.zeros_like(acc_ref)
        acc_ref[...] += jnp.sum(jnp.where(pred == y, 1.0, 0.0)) * inv_B

    loss, acc = pl.pallas_call(
        kernel,
        out_shape=(jax.ShapeDtypeStruct((1, 1), jnp.float32),
                   jax.ShapeDtypeStruct((1, 1), jnp.float32)),
        grid=(1,),
        in_specs=[pl.BlockSpec((B, C), lambda i: (0, 0)),
                  pl.BlockSpec((B, 1), lambda i: (0, 0))],
        out_specs=(pl.BlockSpec((1, 1), lambda i: (0, 0)),
                   pl.BlockSpec((1, 1), lambda i: (0, 0))),
        compiler_params=pltpu.CompilerParams(vmem_limit_bytes=_VMEM_LIMIT),
    )(logits2d, labels2d)
    return loss[0, 0], acc[0, 0]


def _fused_tiled(logits2d, labels2d, inv_B, TB):
    """Tiled path (B > TB): 2-way TensorCore split x reduction over row tiles."""
    B, C = logits2d.shape
    NT = pl.cdiv(B, TB)          # total row tiles (>= 2 here)
    NTC = pl.cdiv(NT, 2)         # tiles per core (grid axis 1)
    OFF = NT - NTC               # core-1 tile offset; overlaps core 0 by one tile iff NT odd

    def row_map(c, i):           # affine, always in [0, NT) — no OOB block indices
        return (c * OFF + i, 0)

    def kernel(x_ref, y_ref, loss_ref, acc_ref, lsum, asum):
        c = pl.program_id(0)
        i = pl.program_id(1)

        @pl.when(i == 0)
        def _init():
            lsum[...] = jnp.zeros_like(lsum)
            asum[...] = jnp.zeros_like(asum)

        t = c * OFF + i                                    # tile actually loaded
        own = jnp.logical_or(c == 0, t >= NTC)             # overlap tile belongs to core 0
        row = lax.broadcasted_iota(jnp.int32, (TB, 1), 0) + t * TB
        valid = jnp.logical_and(row < B, own)              # (TB, 1) bool

        # Pallas does not zero-fill the OOB tail of a partial block -> clamp
        # garbage BEFORE max/exp so NaN/Inf can never poison the accumulators.
        x = jnp.where(valid, x_ref[...].astype(jnp.float32), 0.0)   # (TB, C)
        y = y_ref[...]                                               # (TB, 1)

        m = jnp.max(x, axis=1, keepdims=True)
        lse = jnp.log(jnp.sum(jnp.exp(x - m), axis=1, keepdims=True))
        cls = lax.broadcasted_iota(jnp.int32, (TB, C), 1)
        picked = jnp.sum(jnp.where(cls == y, x - m, 0.0), axis=1, keepdims=True)
        lsum[...] += jnp.where(valid, lse - picked, 0.0)

        pred = jnp.min(jnp.where(x == m, cls, C), axis=1, keepdims=True)
        asum[...] += jnp.where(jnp.logical_and(pred == y, valid), 1.0, 0.0)

        @pl.when(i == pl.num_programs(1) - 1)
        def _finalize():
            loss_ref[...] = jnp.zeros_like(loss_ref)
            loss_ref[...] += jnp.sum(lsum[...]) * inv_B
            acc_ref[...] = jnp.zeros_like(acc_ref)
            acc_ref[...] += jnp.sum(asum[...]) * inv_B

    loss_p, acc_p = pl.pallas_call(
        kernel,
        out_shape=(jax.ShapeDtypeStruct((2, 1, 1), jnp.float32),
                   jax.ShapeDtypeStruct((2, 1, 1), jnp.float32)),
        grid=(2, NTC),
        in_specs=[pl.BlockSpec((TB, C), row_map),
                  pl.BlockSpec((TB, 1), row_map)],
        out_specs=(pl.BlockSpec((1, 1, 1), lambda c, i: (c, 0, 0)),
                   pl.BlockSpec((1, 1, 1), lambda c, i: (c, 0, 0))),
        scratch_shapes=[pltpu.VMEM((TB, 1), jnp.float32),
                        pltpu.VMEM((TB, 1), jnp.float32)],
        compiler_params=pltpu.CompilerParams(
            dimension_semantics=("parallel", "arbitrary"),
            vmem_limit_bytes=_VMEM_LIMIT),
    )(logits2d, labels2d)
    # sum the two per-core partials (already scaled by 1/B)
    return jnp.sum(loss_p), jnp.sum(acc_p)


@partial(jax.jit, static_argnames=("tile_b",))
def _loss_and_accuracy(logits, label, tile_b=None):
    """Returns (mean CE loss, mean accuracy of in-kernel argmax) as scalars."""
    C = logits.shape[-1]
    logits2d = logits.reshape(-1, C)                       # (B, C), native dtype/layout
    B = logits2d.shape[0]
    labels2d = label.reshape(-1, 1).astype(jnp.int32)      # (B, 1)
    inv_B = 1.0 / B

    TB = _TILE_B_DEFAULT if tile_b is None else max(8, _round_up(int(tile_b), 8))
    if B <= TB:
        return _fused_small(logits2d, labels2d, inv_B)
    return _fused_tiled(logits2d, labels2d, inv_B, TB)


# ----------------------------------------------------------------------------
# standalone accuracy kernel (external predictions)
# ----------------------------------------------------------------------------
# TODO(synk): at tiny few-shot B a fused XLA `jnp.mean(pred == label)` is cheaper
# than any kernel launch; kept as a Pallas kernel per the exercise.
@partial(jax.jit, static_argnames=("tile_w",))
def _accuracy(pred, label, tile_w=None):
    p = pred.reshape(-1).astype(jnp.int32)
    l = label.reshape(-1).astype(jnp.int32)
    B = p.shape[0]
    inv_B = 1.0 / B

    # Free (no-copy) dense 2-D view: 8 sublanes when the size allows it.
    R = 8 if (B % 8 == 0) else 1
    W = B // R
    p2 = p.reshape(R, W)
    l2 = l.reshape(R, W)

    cap = _ACC_TILE_W_DEFAULT if tile_w is None else max(128, _round_up(int(tile_w), 128))
    TW = W if W <= cap else cap          # full block (no mask needed) or 128-multiple tile
    grid = (pl.cdiv(W, TW),)

    def kernel(p_ref, l_ref, acc_ref):
        i = pl.program_id(0)

        @pl.when(i == 0)
        def _init():
            acc_ref[...] = jnp.zeros_like(acc_ref)

        col = lax.broadcasted_iota(jnp.int32, (R, TW), 1) + i * TW
        hit = jnp.logical_and(p_ref[...] == l_ref[...], col < W)   # mask ragged tail
        acc_ref[...] += jnp.sum(jnp.where(hit, 1.0, 0.0))

        @pl.when(i == pl.num_programs(0) - 1)
        def _finalize():
            acc_ref[...] *= inv_B

    out = pl.pallas_call(
        kernel,
        out_shape=jax.ShapeDtypeStruct((1, 1), jnp.float32),
        grid=grid,
        in_specs=[pl.BlockSpec((R, TW), lambda i: (0, i)),
                  pl.BlockSpec((R, TW), lambda i: (0, i))],
        out_specs=pl.BlockSpec((1, 1), lambda i: (0, 0)),
        compiler_params=pltpu.CompilerParams(
            dimension_semantics=("arbitrary",),
            vmem_limit_bytes=_VMEM_LIMIT),
    )(p2, l2)
    return out[0, 0]


# ----------------------------------------------------------------------------
# module
# ----------------------------------------------------------------------------
class FewShotREModel:
    """JAX/Pallas counterpart of fewshot_re_kit.framework.FewShotREModel."""

    def __init__(self, my_sentence_encoder=None):
        # TODO(synk): nn.DataParallel is a multi-device execution wrapper with no
        # Pallas equivalent; the encoder is injected externally and unused here.
        self.sentence_encoder = my_sentence_encoder

    def forward(self, support, query, N, K, Q):
        # TODO(synk): forward() is abstract in the reference (NotImplementedError).
        raise NotImplementedError

    def loss(self, logits, label):
        loss, _ = _loss_and_accuracy(logits, label)
        return loss

    def accuracy(self, pred, label):
        return _accuracy(pred, label)

    def loss_and_accuracy(self, logits, label):
        """Fused hot path: one pallas_call emits both scalars (argmax in-kernel)."""
        return _loss_and_accuracy(logits, label)


# ----------------------------------------------------------------------------
if __name__ == "__main__":
    key = jax.random.PRNGKey(0)
    # small few-shot episode: N classes, Q query instances per class
    N, K, Q = 5, 2, 3
    B = N * Q                                              # 15 query instances

    k1, k2 = jax.random.split(key)
    logits = jax.random.normal(k1, (B, N), dtype=jnp.float32)
    label = jax.random.randint(k2, (B,), 0, N, dtype=jnp.int32)
    pred = jnp.argmax(logits, axis=-1).astype(jnp.int32)

    model = FewShotREModel()
    loss = model.loss(logits, label)
    acc = model.accuracy(pred, label)
    f_loss, f_acc = model.loss_and_accuracy(logits, label)
    jax.block_until_ready((loss, acc, f_loss, f_acc))

    ref_loss = -jnp.mean(jax.nn.log_softmax(logits, axis=-1)[jnp.arange(B), label])
    ref_acc = jnp.mean((pred.reshape(-1) == label.reshape(-1)).astype(jnp.float32))
    assert jnp.allclose(loss, ref_loss, atol=1e-5), (loss, ref_loss)
    assert jnp.allclose(acc, ref_acc, atol=1e-6), (acc, ref_acc)
    assert jnp.allclose(f_loss, ref_loss, atol=1e-5), (f_loss, ref_loss)
    assert jnp.allclose(f_acc, ref_acc, atol=1e-6), (f_acc, ref_acc)

    # tiled 2-core path: odd tile count (overlap-tile masking) + ragged last tile
    B2, C2 = 300, 5
    k3, k4 = jax.random.split(k1)
    logits2 = jax.random.normal(k3, (B2, C2), dtype=jnp.float32)
    label2 = jax.random.randint(k4, (B2,), 0, C2, dtype=jnp.int32)
    pred2 = jnp.argmax(logits2, axis=-1).astype(jnp.int32)
    l2, a2 = _loss_and_accuracy(logits2, label2, tile_b=128)
    a2b = _accuracy(pred2, label2, tile_w=128)
    jax.block_until_ready((l2, a2, a2b))
    ref_l2 = -jnp.mean(jax.nn.log_softmax(logits2, -1)[jnp.arange(B2), label2])
    ref_a2 = jnp.mean((pred2 == label2).astype(jnp.float32))
    assert jnp.allclose(l2, ref_l2, atol=1e-5), (l2, ref_l2)
    assert jnp.allclose(a2, ref_a2, atol=1e-6), (a2, ref_a2)
    assert jnp.allclose(a2b, ref_a2, atol=1e-6), (a2b, ref_a2)

    # tiled path with an even tile count and exact tile multiple (no ragged tail)
    B3, C3 = 512, 7
    k5, k6 = jax.random.split(k2)
    logits3 = jax.random.normal(k5, (B3, C3), dtype=jnp.float32)
    label3 = jax.random.randint(k6, (B3,), 0, C3, dtype=jnp.int32)
    l3, a3 = _loss_and_accuracy(logits3, label3, tile_b=128)
    jax.block_until_ready((l3, a3))
    ref_l3 = -jnp.mean(jax.nn.log_softmax(logits3, -1)[jnp.arange(B3), label3])
    ref_a3 = jnp.mean((jnp.argmax(logits3, -1) == label3).astype(jnp.float32))
    assert jnp.allclose(l3, ref_l3, atol=1e-5), (l3, ref_l3)
    assert jnp.allclose(a3, ref_a3, atol=1e-6), (a3, ref_a3)

    # standalone accuracy on an 8-sublane-dense view (B % 8 == 0) with tiling
    p4 = jax.random.randint(k5, (2048,), 0, 5, dtype=jnp.int32)
    l4 = jax.random.randint(k6, (2048,), 0, 5, dtype=jnp.int32)
    a4 = _accuracy(p4, l4, tile_w=128)
    jax.block_until_ready(a4)
    assert jnp.allclose(a4, jnp.mean((p4 == l4).astype(jnp.float32)), atol=1e-6)

    # bf16 logits pass straight through (cast to f32 inside the kernel)
    lb16, ab16 = _loss_and_accuracy(logits.astype(jnp.bfloat16), label)
    jax.block_until_ready((lb16, ab16))
    assert jnp.allclose(lb16, ref_loss, atol=3e-2), (lb16, ref_loss)

    print("KERNEL_OK")
</pallas_src>

<mosaic_0001>
module attributes {stable_mosaic.version = 11 : i64} {
  func.func @kernel(%arg0: i32, %arg1: memref<15x5xf32, #tpu.memory_space<vmem>>, %arg2: memref<15x1xi32, #tpu.memory_space<vmem>>, %arg3: memref<1x1xf32, #tpu.memory_space<vmem>>, %arg4: memref<1x1xf32, #tpu.memory_space<vmem>>) attributes {dimension_semantics = [#tpu.dimension_semantics<arbitrary>], iteration_bounds = array<i64: 1>, scalar_prefetch = 0 : i64, scratch_operands = 0 : i64, tpu.core_type = #tpu.core_type<tc>, window_params = [{pipeline_mode = #tpu.pipeline_mode<synchronous>, transform_indices = @transform_0, window_bounds = array<i64: 15, 5>}, {pipeline_mode = #tpu.pipeline_mode<synchronous>, transform_indices = @transform_1, window_bounds = array<i64: 15, 1>}, {pipeline_mode = #tpu.pipeline_mode<synchronous>, transform_indices = @transform_2, window_bounds = array<i64: 1, 1>}, {pipeline_mode = #tpu.pipeline_mode<synchronous>, transform_indices = @transform_3, window_bounds = array<i64: 1, 1>}]} {
    %c0 = arith.constant 0 : index
    %c0_0 = arith.constant 0 : index
    %0 = vector.load %arg1[%c0, %c0_0] : memref<15x5xf32, #tpu.memory_space<vmem>>, vector<15x5xf32>
    %c0_1 = arith.constant 0 : index
    %c0_2 = arith.constant 0 : index
    %1 = vector.load %arg2[%c0_1, %c0_2] : memref<15x1xi32, #tpu.memory_space<vmem>>, vector<15x1xi32>
    %cst = arith.constant dense<0xFF800000> : vector<15xf32>
    %2 = vector.multi_reduction <maximumf>, %0, %cst [1] : vector<15x5xf32> to vector<15xf32>
    %3 = vector.shape_cast %2 : vector<15xf32> to vector<15x1xf32>
    %4 = vector.broadcast %3 : vector<15x1xf32> to vector<15x5xf32>
    %5 = arith.subf %0, %4 : vector<15x5xf32>
    %6 = math.exp %5 : vector<15x5xf32>
    %cst_3 = arith.constant dense<0.000000e+00> : vector<15xf32>
    %7 = vector.multi_reduction <add>, %6, %cst_3 [1] : vector<15x5xf32> to vector<15xf32>
    %8 = vector.shape_cast %7 : vector<15xf32> to vector<15x1xf32>
    %9 = math.log %8 : vector<15x1xf32>
    %10 = tpu.iota {dimensions = array<i32: 1>} : vector<15x5xi32>
    %11 = vector.broadcast %1 : vector<15x1xi32> to vector<15x5xi32>
    %12 = arith.cmpi eq, %10, %11 : vector<15x5xi32>
    %13 = vector.broadcast %3 : vector<15x1xf32> to vector<15x5xf32>
    %14 = arith.subf %0, %13 : vector<15x5xf32>
    %cst_4 = arith.constant 0.000000e+00 : f32
    %15 = vector.broadcast %cst_4 : f32 to vector<15x5xf32>
    %16 = arith.select %12, %14, %15 : vector<15x5xi1>, vector<15x5xf32>
    %cst_5 = arith.constant dense<0.000000e+00> : vector<15xf32>
    %17 = vector.multi_reduction <add>, %16, %cst_5 [1] : vector<15x5xf32> to vector<15xf32>
    %18 = vector.shape_cast %17 : vector<15xf32> to vector<15x1xf32>
    %cst_6 = arith.constant 0.000000e+00 : f32
    %19 = vector.broadcast %cst_6 : f32 to vector<1x1xf32>
    %c0_7 = arith.constant 0 : index
    %c0_8 = arith.constant 0 : index
    %20 = vector.load %arg3[%c0_7, %c0_8] : memref<1x1xf32, #tpu.memory_space<vmem>>, vector<1x1xf32>
    tpu.vector_store %arg3[%c0_7, %c0_8], %19 {strides = array<i32>} : memref<1x1xf32, #tpu.memory_space<vmem>>, vector<1x1xf32>,
    %c0_9 = arith.constant 0 : index
    %c0_10 = arith.constant 0 : index
    %21 = vector.load %arg3[%c0_9, %c0_10] : memref<1x1xf32, #tpu.memory_space<vmem>>, vector<1x1xf32>
    %22 = arith.subf %9, %18 : vector<15x1xf32>
    %23 = vector.shape_cast %22 : vector<15x1xf32> to vector<1x15x1xf32>
    %cst_11 = arith.constant dense<0.000000e+00> : vector<1xf32>
    %24 = vector.multi_reduction <add>, %23, %cst_11 [1, 2] : vector<1x15x1xf32> to vector<1xf32>
    %25 = vector.shape_cast %24 : vector<1xf32> to vector<1x1x1xf32>
    %26 = vector.extract %25[0, 0, 0] : f32 from vector<1x1x1xf32>
    %cst_12 = arith.constant 0.0666666701 : f32
    %27 = arith.mulf %26, %cst_12 : f32
    %28 = vector.broadcast %27 : f32 to vector<1x1xf32>
    %29 = arith.addf %21, %28 : vector<1x1xf32>
    %c0_13 = arith.constant 0 : index
    %c0_14 = arith.constant 0 : index
    %30 = vector.load %arg3[%c0_13, %c0_14] : memref<1x1xf32, #tpu.memory_space<vmem>>, vector<1x1xf32>
    tpu.vector_store %arg3[%c0_13, %c0_14], %29 {strides = array<i32>} : memref<1x1xf32, #tpu.memory_space<vmem>>, vector<1x1xf32>,
    %31 = vector.broadcast %3 : vector<15x1xf32> to vector<15x5xf32>
    %32 = arith.cmpf oeq, %0, %31 : vector<15x5xf32>
    %c5_i32 = arith.constant 5 : i32
    %33 = vector.broadcast %c5_i32 : i32 to vector<15x5xi32>
    %34 = arith.select %32, %10, %33 : vector<15x5xi1>, vector<15x5xi32>
    %cst_15 = arith.constant dense<2147483647> : vector<15xi32>
    %35 = vector.multi_reduction <minsi>, %34, %cst_15 [1] : vector<15x5xi32> to vector<15xi32>
    %36 = vector.shape_cast %35 : vector<15xi32> to vector<15x1xi32>
    %cst_16 = arith.constant 0.000000e+00 : f32
    %37 = vector.broadcast %cst_16 : f32 to vector<1x1xf32>
    %c0_17 = arith.constant 0 : index
    %c0_18 = arith.constant 0 : index
    %38 = vector.load %arg4[%c0_17, %c0_18] : memref<1x1xf32, #tpu.memory_space<vmem>>, vector<1x1xf32>
    tpu.vector_store %arg4[%c0_17, %c0_18], %37 {strides = array<i32>} : memref<1x1xf32, #tpu.memory_space<vmem>>, vector<1x1xf32>,
    %c0_19 = arith.constant 0 : index
    %c0_20 = arith.constant 0 : index
    %39 = vector.load %arg4[%c0_19, %c0_20] : memref<1x1xf32, #tpu.memory_space<vmem>>, vector<1x1xf32>
    %40 = arith.cmpi eq, %36, %1 : vector<15x1xi32>
    %cst_21 = arith.constant 1.000000e+00 : f32
    %cst_22 = arith.constant 0.000000e+00 : f32
    %41 = vector.broadcast %cst_21 : f32 to vector<15x1xf32>
    %42 = vector.broadcast %cst_22 : f32 to vector<15x1xf32>
    %43 = arith.select %40, %41, %42 : vector<15x1xi1>, vector<15x1xf32>
    %44 = vector.shape_cast %43 : vector<15x1xf32> to vector<1x15x1xf32>
    %cst_23 = arith.constant dense<0.000000e+00> : vector<1xf32>
    %45 = vector.multi_reduction <add>, %44, %cst_23 [1, 2] : vector<1x15x1xf32> to vector<1xf32>
    %46 = vector.shape_cast %45 : vector<1xf32> to vector<1x1x1xf32>
    %47 = vector.extract %46[0, 0, 0] : f32 from vector<1x1x1xf32>
    %cst_24 = arith.constant 0.0666666701 : f32
    %48 = arith.mulf %47, %cst_24 : f32
    %49 = vector.broadcast %48 : f32 to vector<1x1xf32>
    %50 = arith.addf %39, %49 : vector<1x1xf32>
    %c0_25 = arith.constant 0 : index
    %c0_26 = arith.constant 0 : index
    %51 = vector.load %arg4[%c0_25, %c0_26] : memref<1x1xf32, #tpu.memory_space<vmem>>, vector<1x1xf32>
    tpu.vector_store %arg4[%c0_25, %c0_26], %50 {strides = array<i32>} : memref<1x1xf32, #tpu.memory_space<vmem>>, vector<1x1xf32>,
    return
  }
  func.func @transform_0(%arg0: i32) -> (i32, i32) {
    %c0_i32 = arith.constant 0 : i32
    %c0_i32_0 = arith.constant 0 : i32
    %c0_i32_1 = arith.constant 0 : i32
    return %c0_i32, %c0_i32_0 : i32, i32
  }
  func.func @transform_1(%arg0: i32) -> (i32, i32) {
    %c0_i32 = arith.constant 0 : i32
    %c0_i32_0 = arith.constant 0 : i32
    %c0_i32_1 = arith.constant 0 : i32
    return %c0_i32, %c0_i32_0 : i32, i32
  }
  func.func @transform_2(%arg0: i32) -> (i32, i32) {
    %c0_i32 = arith.constant 0 : i32
    %c0_i32_0 = arith.constant 0 : i32
    %c0_i32_1 = arith.constant 0 : i32
    return %c0_i32, %c0_i32_0 : i32, i32
  }
  func.func @transform_3(%arg0: i32) -> (i32, i32) {
    %c0_i32 = arith.constant 0 : i32
    %c0_i32_0 = arith.constant 0 : i32
    %c0_i32_1 = arith.constant 0 : i32
    return %c0_i32, %c0_i32_0 : i32, i32
  }
}

</mosaic_0001>

<llo_original>
// kernel: _loss_and_accuracy.1
$region0: #{_loss_and_accuracy.1}
  #allocation0 [shape = 'u32[]', space=smem, size = 0x4, offset = 0x4, fixed_abs, tag = 'smem constant byte address 0x4 - core index']
  #allocation1 [shape = 'u32[144,128]{1,0:T(1,128)}', space=vmem, size = 0x12000, scoped, tag = 'internal scratch']
  %s0 = inlined_call_operand.vmem [shape: f32[15,5], index: 0, kind: input, shape index: {}]
  %s1 = inlined_call_operand.vmem [shape: s32[15,1], index: 1, kind: input, shape index: {}]
  %s2 = inlined_call_operand.hbm [shape: f32[1,1], index: 2, kind: output, shape index: {0}]
  %s3 = inlined_call_operand.hbm [shape: f32[1,1], index: 3, kind: output, shape index: {1}]
  %4 = xla_tuple %s2, %s3
  %s5 = sld [smem:[#allocation0]]
  $region26: #{_loss_and_accuracy.1} parent=0
    _
  %s7 = ssub.s32 1, %s5
  %s8 = scalar_select 0, %s7, %s5
  $region1: #{_loss_and_accuracy.1} parent=0
    #allocation2 [shape = 'u8[512]{0}', space=vmem, size = 0x400, scoped, tag = 'output window, operand 0, single buffered']
    #allocation3 [shape = 's32[1]{0}', space=sflag, size = 0x4, scoped, tag = 'scoped memory for _loss_and_accuracy.1']
    #allocation4 [shape = 'u8[512]{0}', space=vmem, size = 0x400, scoped, tag = 'output window, operand 1, single buffered']
    #allocation5 [shape = 's32[1]{0}', space=sflag, size = 0x4, scoped, tag = 'scoped memory for _loss_and_accuracy.1']
    %9 = vsyncpa [#allocation3], 0
    %10 = vsyncpa [#allocation5], 0
    // Predicated region
    $region2: #{_loss_and_accuracy.1} parent=1 // pred_check
      _
    $region3: #{_loss_and_accuracy.1} parent=1 // pred_check_branch
      %12 = sbr.rel (0) target = $region5
    $region4: #{_loss_and_accuracy.1} parent=1 // pred_region
      _
    $region5: #{_loss_and_accuracy.1} parent=1 // pred_fallthru
      _
    // Predicated region
    $region6: #{_loss_and_accuracy.1} parent=1 // pred_check
      _
    $region7: #{_loss_and_accuracy.1} parent=1 // pred_check_branch
      %14 = sbr.rel (0) target = $region9
    $region8: #{_loss_and_accuracy.1} parent=1 // pred_region
      _
    $region9: #{_loss_and_accuracy.1} parent=1 // pred_fallthru
      _
    %v15 = vld [vmem:[%s0] sm:$0xff]
    %v16 = vld [vmem:[%s0 + $0x8] sm:$0x7f]
    %v17 = vld [vmem:[%s1] sm:$0xff]
    %v18 = vld [vmem:[%s1 + $0x8] sm:$0x7f]
    %vm19 = vcmask 39936
    %v20 = vsel %vm19, %v15, -inf
    %21 = vmax.xlane.f32.xlu0 %v20
    %v22 = vpop.xlane.xlu0 %21
    %vm23 = vcmask 38912
    %v24 = vsel %vm23, %v16, -inf
    %25 = vmax.xlane.f32.xlu0 %v24
    %v26 = vpop.xlane.xlu0 %25
    %v27 = vsub.f32 %v15, %v22
    %v28 = vsub.f32 %v16, %v26
    %v29 = vmul.f32 %v27, 1.442695
    %v30 = vpow.pop %v29
    %v31 = vmul.f32 %v28, 1.442695
    %v32 = vpow.pop %v31
    %v33 = vsel %vm19, %v30, 0.0
    %34 = vadd.xlane.f32.xlu0 %v33
    %v35 = vpop.xlane.xlu0 %34
    %v36 = vsel %vm23, %v32, 0.0
    %37 = vadd.xlane.f32.xlu0 %v36
    %v38 = vpop.xlane.xlu0 %37
    %v39 = vlog2.pop %v35
    %v40 = vmul.f32 %v39, 0.6931472
    %v41 = vlog2.pop %v38
    %v42 = vmul.f32 %v41, 0.6931472
    %v43 = vlaneseq
    %v44 = vand.u32 %v43, 127
    %45 = vset.pattern.permute.xlu0 0
    %46 = vperm.xlu0 %45, %v17
    %v47 = vpop.permute.xlu0 %46
    %48 = vset.pattern.permute.xlu0 0
    %49 = vperm.xlu0 %48, %v18
    %v50 = vpop.permute.xlu0 %49
    %vm51 = vcmp.eq.s32.totalorder %v44, %v47
    %vm52 = vcmp.eq.s32.totalorder %v44, %v50
    %v53 = vsel %vm51, %v27, 0.0
    %v54 = vsel %vm52, %v28, 0.0
    %v55 = vsel %vm19, %v53, 0.0
    %56 = vadd.xlane.f32.xlu0 %v55
    %v57 = vpop.xlane.xlu0 %56
    %v58 = vsel %vm23, %v54, 0.0
    %59 = vadd.xlane.f32.xlu0 %v58
    %v60 = vpop.xlane.xlu0 %59
    %vm61 = vcmask 0
    %62 = vst.msk [vmem:[#allocation2] sm:$0x1] %vm61, 0.0
    %v63 = vld [vmem:[#allocation2] sm:$0x1]
    %v64 = vsub.f32 %v40, %v57
    %v65 = vsub.f32 %v42, %v60
    %vm66 = vcmask 7168
    %v67 = vsel %vm66, %v64, 0.0
    %vm68 = vcmask 6144
    %v69 = vsel %vm68, %v65, 0.0
    %v70 = vadd.f32 %v67, %v69
    %71 = vadd.xlane.f32.xlu0 %v70
    %v72 = vpop.xlane.xlu0 %71
    %v73 = vrot.slane %v72, 4
    %v74 = vadd.f32 %v72, %v73
    %v75 = vrot.slane %v74, 2
    %v76 = vadd.f32 %v74, %v75
    %v77 = vrot.slane %v76, 1
    %v78 = vadd.f32 %v76, %v77
    %s79 = vtos %v78
    %s80 = smul.f32 %s79, 0.06666667
    %v81 = vstv %s80
    %v82 = vadd.f32 %v63, %v81
    %83 = vst.msk [vmem:[#allocation2] sm:$0x1] %vm61, %v82
    %vm84 = vcmp.eq.f32.partialorder %v15, %v22
    %vm85 = vcmp.eq.f32.partialorder %v16, %v26
    %v86 = vsel %vm84, %v44, 5
    %v87 = vsel %vm85, %v44, 5
    %v88 = vsel %vm19, %v86, 2147483647
    %v89 = vand.u32 %v88, 65535
    %v90 = vshra.s32 %v88, 16
    %v91 = vcvt.s32.f32 %v89
    %v92 = vcvt.s32.f32 %v90
    %93 = vmin.xlane.f32.xlu0 %v92
    %v94 = vpop.xlane.xlu0 %93
    %vm95 = vcmp.eq.f32.partialorder %v92, %v94
    %v96 = vsel %vm95, %v91, inf
    %97 = vmin.xlane.f32.xlu0 %v96
    %v98 = vpop.xlane.xlu0 %97
    %v99 = vcvt.f32.s32 %v98
    %v100 = vcvt.f32.s32 %v94
    %v101 = vshll.u32 %v100, 16
    %v102 = vadd.s32 %v101, %v99
    %v103 = vsel %vm23, %v87, 2147483647
    %v104 = vand.u32 %v103, 65535
    %v105 = vshra.s32 %v103, 16
    %v106 = vcvt.s32.f32 %v104
    %v107 = vcvt.s32.f32 %v105
    %108 = vmin.xlane.f32.xlu0 %v107
    %v109 = vpop.xlane.xlu0 %108
    %vm110 = vcmp.eq.f32.partialorder %v107, %v109
    %v111 = vsel %vm110, %v106, inf
    %112 = vmin.xlane.f32.xlu0 %v111
    %v113 = vpop.xlane.xlu0 %112
    %v114 = vcvt.f32.s32 %v113
    %v115 = vcvt.f32.s32 %v109
    %v116 = vshll.u32 %v115, 16
    %v117 = vadd.s32 %v116, %v114
    %118 = vst.msk [vmem:[#allocation4] sm:$0x1] %vm61, 0.0
    %v119 = vld [vmem:[#allocation4] sm:$0x1]
    %vm120 = vcmp.eq.s32.totalorder %v102, %v17
    %vm121 = vcmp.eq.s32.totalorder %v117, %v18
    %v122 = vsel %vm120, 1.0, 0.0
    %v123 = vsel %vm121, 1.0, 0.0
    %v124 = vsel %vm66, %v122, 0.0
    %v125 = vsel %vm68, %v123, 0.0
    %v126 = vadd.f32 %v124, %v125
    %127 = vadd.xlane.f32.xlu0 %v126
    %v128 = vpop.xlane.xlu0 %127
    %v129 = vrot.slane %v128, 4
    %v130 = vadd.f32 %v128, %v129
    %v131 = vrot.slane %v130, 2
    %v132 = vadd.f32 %v130, %v131
    %v133 = vrot.slane %v132, 1
    %v134 = vadd.f32 %v132, %v133
    %s135 = vtos %v134
    %s136 = smul.f32 %s135, 0.06666667
    %v137 = vstv %s136
    %v138 = vadd.f32 %v119, %v137
    %139 = vst.msk [vmem:[#allocation4] sm:$0x1] %vm61, %v138
    // Predicated region
    $region10: #{_loss_and_accuracy.1} parent=1 // pred_check
      _
    $region11: #{_loss_and_accuracy.1} parent=1 // pred_check_branch
      %141 = sbr.rel (0) target = $region13
    $region12: #{_loss_and_accuracy.1} parent=1 // pred_region
      %s143 = ssub.s32 16, 16
      %144 = vsyncadd [#allocation3], %s143
      %s146 = sshll.u32 [#allocation2], 4
      %s147 = int_to_ptr.vmem [resolvable:$true] %s146
      %149 = dma.vmem_to_hbm [thread:$0]  %s147, 16, %s2, [#allocation3]
    $region13: #{_loss_and_accuracy.1} parent=1 // pred_fallthru
      _
    // Predicated region
    $region14: #{_loss_and_accuracy.1} parent=1 // pred_check
      _
    $region15: #{_loss_and_accuracy.1} parent=1 // pred_check_branch
      %151 = sbr.rel (0) target = $region17
    $region16: #{_loss_and_accuracy.1} parent=1 // pred_region
      %s153 = ssub.s32 16, 16
      %154 = vsyncadd [#allocation5], %s153
      %s156 = sshll.u32 [#allocation4], 4
      %s157 = int_to_ptr.vmem [resolvable:$true] %s156
      %159 = dma.vmem_to_hbm [thread:$0]  %s157, 16, %s3, [#allocation5]
    $region17: #{_loss_and_accuracy.1} parent=1 // pred_fallthru
      _
    // Predicated region
    $region18: #{_loss_and_accuracy.1} parent=1 // pred_check
      _
    $region19: #{_loss_and_accuracy.1} parent=1 // pred_check_branch
      %161 = sbr.rel (0) target = $region21
    $region20: #{_loss_and_accuracy.1} parent=1 // pred_region
      %162 = dma.done [#allocation3], 16
    $region21: #{_loss_and_accuracy.1} parent=1 // pred_fallthru
      _
    // Predicated region
    $region22: #{_loss_and_accuracy.1} parent=1 // pred_check
      _
    $region23: #{_loss_and_accuracy.1} parent=1 // pred_check_branch
      %164 = sbr.rel (0) target = $region25
    $region24: #{_loss_and_accuracy.1} parent=1 // pred_region
      %165 = dma.done [#allocation5], 16
    $region25: #{_loss_and_accuracy.1} parent=1 // pred_fallthru
      _
    %166 = vsyncpa [#allocation3], 1
    %167 = vsyncpa [#allocation5], 1

</llo_original>
